<compile_context>
chip_gen: v5e
topology: v5e:2x2
jax: 0.10.0
libtpu: 0.0.40
codegen_flags: <defaults>
</compile_context>

<pallas_src>
import functools

import jax
import jax.numpy as jnp
from jax.experimental import pallas as pl
from jax.experimental.pallas import tpu as pltpu

LANE = 128


def _round_up(n, m):
    return ((n + m - 1) // m) * m


def _bf16_epilogue_supported():
    """bf16 VPU exists on v6e/v7x; v5e (and older) keeps the f32 epilogue."""
    try:
        kind = jax.devices()[0].device_kind.lower()
    except Exception:
        return True
    return not any(v in kind for v in ("v2", "v3", "v4", "v5"))


def _decoder_kernel(x_ref, w1_ref, w2_ref, w3_ref, wo_ref, b_ref, out_ref, *,
                    hp, op, bf16_epilogue):
    """Fused MLP decoder tile: 3x (matmul + bias + relu) -> matmul + bias + sigmoid.

    x_ref  : (TM, Hp) bf16 activation tile (batch rows on sublanes, features on lanes)
    w*_ref : bf16 weights (in, out), VMEM-resident across the whole (parallel) grid
    b_ref  : (4, max(Hp, Op)) f32 packed biases (single lane-aligned tile)
    out_ref: (TM, Op) f32 lane-dense output tile (Op is a multiple of 128)
    """
    h = x_ref[...]  # already bf16 -> goes straight to the MXU

    def hidden_layer(h_bf16, w_ref, row):
        acc = jnp.dot(h_bf16, w_ref[...], preferred_element_type=jnp.float32)
        if bf16_epilogue:
            # v6e/v7x: bias+ReLU at half vreg width; bf16 downcast fused in.
            b = b_ref[row:row + 1, :hp].astype(jnp.bfloat16)
            return jnp.maximum(acc.astype(jnp.bfloat16) + b, 0.0)
        # v5e: f32-only VPU -> add/ReLU in f32, fuse the bf16 downcast for the
        # next MXU pass.
        return jnp.maximum(acc + b_ref[row:row + 1, :hp], 0.0).astype(jnp.bfloat16)

    h = hidden_layer(h, w1_ref, 0)
    h = hidden_layer(h, w2_ref, 1)
    h = hidden_layer(h, w3_ref, 2)

    # Output head: Linear(H, Op) + Sigmoid (padded output lanes sliced off in wrapper).
    logits = jnp.dot(h, wo_ref[...], preferred_element_type=jnp.float32)
    logits = logits + b_ref[3:4, :op]
    # exp -> EUP, reciprocal(approx) -> EUP vrcp: keeps the epilogue off the VALU.
    out_ref[...] = pl.reciprocal(1.0 + jnp.exp(-logits), approx=True).astype(out_ref.dtype)


def prepare_decoder_params(params):
    """One-time prep: pad + cast weights to bf16, pack the four biases into one tile.

    Call once and reuse the result across decode steps so the per-call wrapper
    does no weight re-cast / re-pad work.
    """
    H = params["W1"].shape[0]
    O = params["Wo"].shape[1]
    Hp = _round_up(H, LANE)
    Op = _round_up(O, LANE)
    Wmax = max(Hp, Op)

    def pad_w(w, rows, cols):
        wb = w.astype(jnp.bfloat16)
        if wb.shape == (rows, cols):
            return wb
        return jnp.zeros((rows, cols), jnp.bfloat16).at[: w.shape[0], : w.shape[1]].set(wb)

    bias = jnp.zeros((4, Wmax), jnp.float32)
    bias = bias.at[0, :H].set(params["b1"].reshape(-1))
    bias = bias.at[1, :H].set(params["b2"].reshape(-1))
    bias = bias.at[2, :H].set(params["b3"].reshape(-1))
    bias = bias.at[3, :O].set(params["bo"].reshape(-1))

    return dict(
        w1=pad_w(params["W1"], Hp, Hp),
        w2=pad_w(params["W2"], Hp, Hp),
        w3=pad_w(params["W3"], Hp, Hp),
        wo=pad_w(params["Wo"], Hp, Op),
        bias=bias,
        H=H, O=O, Hp=Hp, Op=Op,
    )


def _pick_tile_m(B, *, max_tile=512, min_grid=2):
    # Keep >=2 grid steps when possible (dual-TC v7x sharding) but make tiles fat
    # otherwise; 16-row granularity keeps bf16 activation blocks sublane-aligned.
    tile = _round_up(max(pl.cdiv(B, min_grid), 1), 16)
    return min(max_tile, tile)


def decoder_rnn_forward(x, prep, *, max_tile_m=512):
    """x: (B, H) float32/bfloat16. prep: output of prepare_decoder_params."""
    B, H = x.shape
    assert H == prep["H"], (H, prep["H"])
    Hp, Op, O = prep["Hp"], prep["Op"], prep["O"]
    Wmax = prep["bias"].shape[1]

    tile_m = _pick_tile_m(B, max_tile=max_tile_m)
    Bp = _round_up(B, tile_m)
    grid_m = Bp // tile_m

    # bf16 activations halve the input DMA; skip the pad copy in the aligned case.
    xb = x.astype(jnp.bfloat16)
    if Bp != B or Hp != H:
        # Zero padding is inert: padded x columns / weight rows+cols / biases are 0,
        # so padded hidden lanes stay exactly 0 through Linear+ReLU and padded
        # output lanes are discarded by the final slice.
        xb = jnp.zeros((Bp, Hp), jnp.bfloat16).at[:B, :H].set(xb)

    kernel = functools.partial(
        _decoder_kernel, hp=Hp, op=Op, bf16_epilogue=_bf16_epilogue_supported())

    flops = 2 * Bp * (3 * Hp * Hp + Hp * Op)
    bytes_accessed = (
        Bp * Hp * 2                          # bf16 activations in
        + (3 * Hp * Hp + Hp * Op) * 2        # bf16 weights (DMA'd once per call)
        + 4 * Wmax * 4                       # packed biases
        + Bp * Op * 4                        # f32 output
    )

    out_padded = pl.pallas_call(
        kernel,
        out_shape=jax.ShapeDtypeStruct((Bp, Op), jnp.float32),
        grid=(grid_m,),
        in_specs=[
            pl.BlockSpec((tile_m, Hp), lambda i: (i, 0)),  # activations: tiled over batch
            pl.BlockSpec((Hp, Hp), lambda i: (0, 0)),      # weights: constant index_map
            pl.BlockSpec((Hp, Hp), lambda i: (0, 0)),      #   -> resident across grid steps
            pl.BlockSpec((Hp, Hp), lambda i: (0, 0)),
            pl.BlockSpec((Hp, Op), lambda i: (0, 0)),
            pl.BlockSpec((4, Wmax), lambda i: (0, 0)),     # packed biases, one tile
        ],
        out_specs=pl.BlockSpec((tile_m, Op), lambda i: (i, 0)),
        compiler_params=pltpu.CompilerParams(
            dimension_semantics=("parallel",),
        ),
        cost_estimate=pl.CostEstimate(
            flops=int(flops),
            transcendentals=int(Bp * Op),
            bytes_accessed=int(bytes_accessed),
        ),
    )(xb, prep["w1"], prep["w2"], prep["w3"], prep["wo"], prep["bias"])

    return out_padded[:B, :O]


# TODO(synk): for a real per-token decode loop, fold the timestep axis into the
# grid (extra "arbitrary" axis; weights with constant index_maps stay
# VMEM-resident) or use cross-call prefetch instead of relaunching per token.


def init_params(key, hidden_size, output_size):
    """PyTorch nn.Linear-style init: U[-1/sqrt(fan_in), 1/sqrt(fan_in)]."""
    def linear(k, fan_in, fan_out):
        kw, kb = jax.random.split(k)
        bound = 1.0 / jnp.sqrt(fan_in)
        W = jax.random.uniform(kw, (fan_in, fan_out), jnp.float32, -bound, bound)
        b = jax.random.uniform(kb, (1, fan_out), jnp.float32, -bound, bound)
        return W, b

    k1, k2, k3, k4 = jax.random.split(key, 4)
    W1, b1 = linear(k1, hidden_size, hidden_size)
    W2, b2 = linear(k2, hidden_size, hidden_size)
    W3, b3 = linear(k3, hidden_size, hidden_size)
    Wo, bo = linear(k4, hidden_size, output_size)
    return dict(W1=W1, b1=b1, W2=W2, b2=b2, W3=W3, b3=b3, Wo=Wo, bo=bo)


def reference_forward(x, p):
    """Pure-JAX reference mirroring the kernel's bf16-weight / f32-accum MXU path.

    Note: this validates against the kernel's quantization choice (bf16 matmuls),
    not a strict f32 PyTorch DecoderRNN; expect ~1e-2-level drift vs full f32.
    """
    def lin(h, W, b):
        return jnp.dot(h.astype(jnp.bfloat16), W.astype(jnp.bfloat16),
                       preferred_element_type=jnp.float32) + b

    h = jnp.maximum(lin(x, p["W1"], p["b1"]), 0.0)
    h = jnp.maximum(lin(h, p["W2"], p["b2"]), 0.0)
    h = jnp.maximum(lin(h, p["W3"], p["b3"]), 0.0)
    return jax.nn.sigmoid(lin(h, p["Wo"], p["bo"]))


# TODO(synk): DecoderRNN.initHidden is a trivial host-side zeros tensor; no kernel needed.

if __name__ == "__main__":
    # Batched rows so MXU tiles are full; hidden = 128 maps exactly onto lanes,
    # output 64 is padded to a lane-dense 128 in-kernel and sliced afterwards.
    B = 256
    hidden_size = 128
    output_size = 64

    key = jax.random.PRNGKey(0)
    k_params, k_x = jax.random.split(key)
    params = init_params(k_params, hidden_size, output_size)
    x = jax.random.normal(k_x, (B, hidden_size), jnp.float32)

    # One-time prepare (cache this across decode steps in real use).
    prep = prepare_decoder_params(params)

    out = jax.block_until_ready(decoder_rnn_forward(x, prep))
    ref = reference_forward(x, params)

    assert out.shape == (B, output_size), out.shape
    max_err = float(jnp.max(jnp.abs(out - ref)))
    assert max_err < 1e-2, max_err

    print("KERNEL_OK")
</pallas_src>

<mosaic_0001>
module attributes {stable_mosaic.version = 11 : i64} {
  func.func @_decoder_kernel(%arg0: i32, %arg1: memref<128x128xbf16, #tpu.memory_space<vmem>>, %arg2: memref<128x128xbf16, #tpu.memory_space<vmem>>, %arg3: memref<128x128xbf16, #tpu.memory_space<vmem>>, %arg4: memref<128x128xbf16, #tpu.memory_space<vmem>>, %arg5: memref<128x128xbf16, #tpu.memory_space<vmem>>, %arg6: memref<4x128xf32, #tpu.memory_space<vmem>>, %arg7: memref<128x128xf32, #tpu.memory_space<vmem>>) attributes {dimension_semantics = [#tpu.dimension_semantics<parallel>], iteration_bounds = array<i64: 2>, scalar_prefetch = 0 : i64, scratch_operands = 0 : i64, tpu.core_type = #tpu.core_type<tc>, window_params = [{transform_indices = @transform_0, window_bounds = array<i64: 128, 128>}, {pipeline_mode = #tpu.pipeline_mode<synchronous>, transform_indices = @transform_1, window_bounds = array<i64: 128, 128>}, {pipeline_mode = #tpu.pipeline_mode<synchronous>, transform_indices = @transform_2, window_bounds = array<i64: 128, 128>}, {pipeline_mode = #tpu.pipeline_mode<synchronous>, transform_indices = @transform_3, window_bounds = array<i64: 128, 128>}, {pipeline_mode = #tpu.pipeline_mode<synchronous>, transform_indices = @transform_4, window_bounds = array<i64: 128, 128>}, {pipeline_mode = #tpu.pipeline_mode<synchronous>, transform_indices = @transform_5, window_bounds = array<i64: 4, 128>}, {transform_indices = @transform_6, window_bounds = array<i64: 128, 128>}]} {
    %c0 = arith.constant 0 : index
    %c0_0 = arith.constant 0 : index
    %0 = vector.load %arg1[%c0, %c0_0] : memref<128x128xbf16, #tpu.memory_space<vmem>>, vector<128x128xbf16>
    %c0_1 = arith.constant 0 : index
    %c0_2 = arith.constant 0 : index
    %1 = vector.load %arg2[%c0_1, %c0_2] : memref<128x128xbf16, #tpu.memory_space<vmem>>, vector<128x128xbf16>
    %cst = arith.constant dense<0.000000e+00> : vector<128x128xf32>
    %2 = tpu.matmul %0, %1, %cst {dimension_numbers = #tpu.dot_dimension_numbers<[1], [0], [0], [1], [0, 0, 1, 1], [], []>} : vector<128x128xbf16>, vector<128x128xbf16>, vector<128x128xf32> -> vector<128x128xf32>
    %c0_3 = arith.constant 0 : index
    %c0_4 = arith.constant 0 : index
    %3 = vector.load %arg6[%c0_3, %c0_4] : memref<4x128xf32, #tpu.memory_space<vmem>>, vector<1x128xf32>
    %4 = arith.truncf %3 : vector<1x128xf32> to vector<1x128xbf16>
    %5 = arith.truncf %2 : vector<128x128xf32> to vector<128x128xbf16>
    %6 = vector.broadcast %4 : vector<1x128xbf16> to vector<128x128xbf16>
    %7 = arith.addf %5, %6 : vector<128x128xbf16>
    %cst_5 = arith.constant 0.000000e+00 : bf16
    %8 = vector.broadcast %cst_5 : bf16 to vector<128x128xbf16>
    %9 = arith.maximumf %7, %8 : vector<128x128xbf16>
    %c0_6 = arith.constant 0 : index
    %c0_7 = arith.constant 0 : index
    %10 = vector.load %arg3[%c0_6, %c0_7] : memref<128x128xbf16, #tpu.memory_space<vmem>>, vector<128x128xbf16>
    %cst_8 = arith.constant dense<0.000000e+00> : vector<128x128xf32>
    %11 = tpu.matmul %9, %10, %cst_8 {dimension_numbers = #tpu.dot_dimension_numbers<[1], [0], [0], [1], [0, 0, 1, 1], [], []>} : vector<128x128xbf16>, vector<128x128xbf16>, vector<128x128xf32> -> vector<128x128xf32>
    %c1 = arith.constant 1 : index
    %c0_9 = arith.constant 0 : index
    %12 = vector.load %arg6[%c1, %c0_9] : memref<4x128xf32, #tpu.memory_space<vmem>>, vector<1x128xf32>
    %13 = arith.truncf %12 : vector<1x128xf32> to vector<1x128xbf16>
    %14 = arith.truncf %11 : vector<128x128xf32> to vector<128x128xbf16>
    %15 = vector.broadcast %13 : vector<1x128xbf16> to vector<128x128xbf16>
    %16 = arith.addf %14, %15 : vector<128x128xbf16>
    %cst_10 = arith.constant 0.000000e+00 : bf16
    %17 = vector.broadcast %cst_10 : bf16 to vector<128x128xbf16>
    %18 = arith.maximumf %16, %17 : vector<128x128xbf16>
    %c0_11 = arith.constant 0 : index
    %c0_12 = arith.constant 0 : index
    %19 = vector.load %arg4[%c0_11, %c0_12] : memref<128x128xbf16, #tpu.memory_space<vmem>>, vector<128x128xbf16>
    %cst_13 = arith.constant dense<0.000000e+00> : vector<128x128xf32>
    %20 = tpu.matmul %18, %19, %cst_13 {dimension_numbers = #tpu.dot_dimension_numbers<[1], [0], [0], [1], [0, 0, 1, 1], [], []>} : vector<128x128xbf16>, vector<128x128xbf16>, vector<128x128xf32> -> vector<128x128xf32>
    %c2 = arith.constant 2 : index
    %c0_14 = arith.constant 0 : index
    %21 = vector.load %arg6[%c2, %c0_14] : memref<4x128xf32, #tpu.memory_space<vmem>>, vector<1x128xf32>
    %22 = arith.truncf %21 : vector<1x128xf32> to vector<1x128xbf16>
    %23 = arith.truncf %20 : vector<128x128xf32> to vector<128x128xbf16>
    %24 = vector.broadcast %22 : vector<1x128xbf16> to vector<128x128xbf16>
    %25 = arith.addf %23, %24 : vector<128x128xbf16>
    %cst_15 = arith.constant 0.000000e+00 : bf16
    %26 = vector.broadcast %cst_15 : bf16 to vector<128x128xbf16>
    %27 = arith.maximumf %25, %26 : vector<128x128xbf16>
    %c0_16 = arith.constant 0 : index
    %c0_17 = arith.constant 0 : index
    %28 = vector.load %arg5[%c0_16, %c0_17] : memref<128x128xbf16, #tpu.memory_space<vmem>>, vector<128x128xbf16>
    %cst_18 = arith.constant dense<0.000000e+00> : vector<128x128xf32>
    %29 = tpu.matmul %27, %28, %cst_18 {dimension_numbers = #tpu.dot_dimension_numbers<[1], [0], [0], [1], [0, 0, 1, 1], [], []>} : vector<128x128xbf16>, vector<128x128xbf16>, vector<128x128xf32> -> vector<128x128xf32>
    %c3 = arith.constant 3 : index
    %c0_19 = arith.constant 0 : index
    %30 = vector.load %arg6[%c3, %c0_19] : memref<4x128xf32, #tpu.memory_space<vmem>>, vector<1x128xf32>
    %31 = vector.broadcast %30 : vector<1x128xf32> to vector<128x128xf32>
    %32 = arith.addf %29, %31 : vector<128x128xf32>
    %cst_20 = arith.constant 0.000000e+00 : f32
    %33 = vector.broadcast %cst_20 : f32 to vector<128x128xf32>
    %34 = arith.subf %33, %32 : vector<128x128xf32>
    %35 = math.exp %34 : vector<128x128xf32>
    %cst_21 = arith.constant 1.000000e+00 : f32
    %36 = vector.broadcast %cst_21 : f32 to vector<128x128xf32>
    %37 = arith.addf %36, %35 : vector<128x128xf32>
    %38 = tpu.reciprocal %37 {approx = true} : vector<128x128xf32> -> vector<128x128xf32>
    %c0_22 = arith.constant 0 : index
    %c0_23 = arith.constant 0 : index
    %39 = vector.load %arg7[%c0_22, %c0_23] : memref<128x128xf32, #tpu.memory_space<vmem>>, vector<128x128xf32>
    tpu.vector_store %arg7[%c0_22, %c0_23], %38 {strides = array<i32>} : memref<128x128xf32, #tpu.memory_space<vmem>>, vector<128x128xf32>,
    return
  }
  func.func @transform_0(%arg0: i32) -> (i32, i32) {
    %c0_i32 = arith.constant 0 : i32
    %c0_i32_0 = arith.constant 0 : i32
    return %arg0, %c0_i32 : i32, i32
  }
  func.func @transform_1(%arg0: i32) -> (i32, i32) {
    %c0_i32 = arith.constant 0 : i32
    %c0_i32_0 = arith.constant 0 : i32
    %c0_i32_1 = arith.constant 0 : i32
    return %c0_i32, %c0_i32_0 : i32, i32
  }
  func.func @transform_2(%arg0: i32) -> (i32, i32) {
    %c0_i32 = arith.constant 0 : i32
    %c0_i32_0 = arith.constant 0 : i32
    %c0_i32_1 = arith.constant 0 : i32
    return %c0_i32, %c0_i32_0 : i32, i32
  }
  func.func @transform_3(%arg0: i32) -> (i32, i32) {
    %c0_i32 = arith.constant 0 : i32
    %c0_i32_0 = arith.constant 0 : i32
    %c0_i32_1 = arith.constant 0 : i32
    return %c0_i32, %c0_i32_0 : i32, i32
  }
  func.func @transform_4(%arg0: i32) -> (i32, i32) {
    %c0_i32 = arith.constant 0 : i32
    %c0_i32_0 = arith.constant 0 : i32
    %c0_i32_1 = arith.constant 0 : i32
    return %c0_i32, %c0_i32_0 : i32, i32
  }
  func.func @transform_5(%arg0: i32) -> (i32, i32) {
    %c0_i32 = arith.constant 0 : i32
    %c0_i32_0 = arith.constant 0 : i32
    %c0_i32_1 = arith.constant 0 : i32
    return %c0_i32, %c0_i32_0 : i32, i32
  }
  func.func @transform_6(%arg0: i32) -> (i32, i32) {
    %c0_i32 = arith.constant 0 : i32
    %c0_i32_0 = arith.constant 0 : i32
    return %arg0, %c0_i32 : i32, i32
  }
}

</mosaic_0001>

<llo_original>
// kernel: tpu_custom_call.1
$region0: #{tpu_custom_call.1}
  #allocation0 [shape = 'u32[]', space=smem, size = 0x4, offset = 0x4, fixed_abs, tag = 'smem constant byte address 0x4 - core index']
  #allocation1 [shape = 'u32[72,128]{1,0:T(1,128)}', space=vmem, size = 0x9000, scoped, tag = 'internal scratch']
  %s0 = inlined_call_operand.hbm [shape: bf16[256,128], index: 0, kind: input, shape index: {}]
  %s1 = inlined_call_operand.hbm [shape: bf16[128,128], index: 1, kind: input, shape index: {}]
  %s2 = inlined_call_operand.hbm [shape: bf16[128,128], index: 2, kind: input, shape index: {}]
  %s3 = inlined_call_operand.hbm [shape: bf16[128,128], index: 3, kind: input, shape index: {}]
  %s4 = inlined_call_operand.hbm [shape: bf16[128,128], index: 4, kind: input, shape index: {}]
  %s5 = inlined_call_operand.vmem [shape: f32[4,128], index: 5, kind: input, shape index: {}]
  %s6 = inlined_call_operand.hbm [shape: f32[256,128], index: 6, kind: output, shape index: {}]
  %s7 = sld [smem:[#allocation0]]
  $region77: #{tpu_custom_call.1} parent=0
    _
  %s9 = ssub.s32 1, %s7
  %s10 = scalar_select 0, %s9, %s7
  $region1: #{tpu_custom_call.1} parent=0
    #allocation2 [shape = 'u8[65536]{0}', space=vmem, size = 0x10000, scoped, tag = 'input window, operand 0']
    #allocation3 [shape = 's32[2]{0}', space=sflag, size = 0x8, scoped, tag = 'scoped memory for tpu_custom_call.1']
    #allocation4 [shape = 's32[2]{0}', space=sflag, size = 0x8, scoped, tag = 'scoped memory for tpu_custom_call.1']
    #allocation5 [shape = 'u8[32768]{0}', space=vmem, size = 0x8000, scoped, tag = 'input window, operand 1, single buffered']
    #allocation6 [shape = 's32[1]{0}', space=sflag, size = 0x4, scoped, tag = 'scoped memory for tpu_custom_call.1']
    #allocation7 [shape = 'u8[32768]{0}', space=vmem, size = 0x8000, scoped, tag = 'input window, operand 2, single buffered']
    #allocation8 [shape = 'u8[32768]{0}', space=vmem, size = 0x8000, scoped, tag = 'input window, operand 3, single buffered']
    #allocation9 [shape = 's32[1]{0}', space=sflag, size = 0x4, scoped, tag = 'scoped memory for tpu_custom_call.1']
    #allocation10 [shape = 'u8[32768]{0}', space=vmem, size = 0x8000, scoped, tag = 'input window, operand 4, single buffered']
    #allocation11 [shape = 'u8[131072]{0}', space=vmem, size = 0x20000, scoped, tag = 'output window, operand 0']
    %11 = vsyncpa [#allocation3], 0
    %s12 = scalar_lea.sflag [#allocation3], 1
    %13 = vsyncpa %s12, 0
    %14 = vsyncpa [#allocation6], 0
    %15 = vsyncpa [#allocation9], 0
    %16 = vsyncpa [#allocation4], 0
    %s17 = scalar_lea.sflag [#allocation4], 1
    %18 = vsyncpa %s17, 0
    loop: start=0, step=1, limit=4
    $region2: #{tpu_custom_call.1} parent=1 // loop_pre_header
      _
    $region3: #{tpu_custom_call.1} parent=1 // loop_header
      %s20 = sphi 0, %s24
      %p21 = scmp.ge.s32.totalorder %s20, 4
      %s30 = sphi 0, %s32
      %s33 = sphi 0, %s30
      %s34 = sphi 0, %s33
      %s50 = sphi 0, %s34
      %s54 = sphi 0, %s54
      %s56 = sphi 0, %s54
      %s57 = sphi 0, %s56
      %s71 = sphi 0, %s57
      %s75 = sphi 0, %s75
      %s77 = sphi 0, %s75
      %s78 = sphi 0, %s77
      %s92 = sphi 0, %s78
      %s96 = sphi 0, %s96
      %s98 = sphi 0, %s96
      %s99 = sphi 0, %s98
      %s113 = sphi 0, %s99
      %s117 = sphi 0, %s117
      %s119 = sphi 0, %s117
      %s120 = sphi 0, %s119
      %s134 = sphi 0, %s120
      %s138 = sphi 0, %s138
      %s140 = sphi 0, %s138
      %s141 = sphi 0, %s140
      %s155 = sphi 0, %s141
      %s161 = sphi 0, %s163
      %s164 = sphi 0, %s161
      %s165 = sphi 0, %s164
      %s181 = sphi 0, %s165
    $region4: #{tpu_custom_call.1} parent=1 // loop_header_branch
      %23 = sbr.rel (%p21) target = $region8
    $region5: #{tpu_custom_call.1} parent=1 // loop_body
      %s25 = ssub.s32 %s20, 1
      %s26 = ssub.s32 %s20, 2
      %s27 = sadd.s32 %s20, 1
      %s28 = ssub.s32 %s20, %s27
      %p29 = scmp.eq.s32.totalorder %s28, 0
      %s31 = sadd.s32 %s30, 1
      %s32 = scalar_select %p29, %s30, %s31
      %p35 = pneg %p29
      %p36 = scmp.eq.s32.totalorder %s20, 1
      %p37 = por %p35, %p36
      %p38 = scmp.ne.s32.totalorder %s30, %s33
      %p39 = scmp.eq.s32.totalorder %s20, 0
      %p40 = por %p38, %p39
      %p41 = scmp.ne.s32.totalorder %s30, %s33
      %p42 = scmp.eq.s32.totalorder %s25, 1
      %p43 = por %p41, %p42
      %p44 = scmp.ne.s32.totalorder %s33, %s34
      %p45 = scmp.eq.s32.totalorder %s25, 0
      %p46 = por %p44, %p45
      %p47 = scmp.ne.s32.totalorder %s33, %s34
      %p48 = scmp.eq.s32.totalorder %s26, 1
      %p49 = por %p47, %p48
      %p51 = scmp.ne.s32.totalorder %s34, %s50
      %p52 = scmp.eq.s32.totalorder %s26, 0
      %p53 = por %p51, %p52
      %s55 = sadd.s32 %s54, 1
      %p58 = scmp.eq.s32.totalorder %s20, 1
      %p59 = scmp.ne.s32.totalorder %s54, %s56
      %p60 = scmp.eq.s32.totalorder %s20, 0
      %p61 = por %p59, %p60
      %p62 = scmp.ne.s32.totalorder %s54, %s56
      %p63 = scmp.eq.s32.totalorder %s25, 1
      %p64 = por %p62, %p63
      %p65 = scmp.ne.s32.totalorder %s56, %s57
      %p66 = scmp.eq.s32.totalorder %s25, 0
      %p67 = por %p65, %p66
      %p68 = scmp.ne.s32.totalorder %s56, %s57
      %p69 = scmp.eq.s32.totalorder %s26, 1
      %p70 = por %p68, %p69
      %p72 = scmp.ne.s32.totalorder %s57, %s71
      %p73 = scmp.eq.s32.totalorder %s26, 0
      %p74 = por %p72, %p73
      %s76 = sadd.s32 %s75, 1
      %p79 = scmp.eq.s32.totalorder %s20, 1
      %p80 = scmp.ne.s32.totalorder %s75, %s77
      %p81 = scmp.eq.s32.totalorder %s20, 0
      %p82 = por %p80, %p81
      %p83 = scmp.ne.s32.totalorder %s75, %s77
      %p84 = scmp.eq.s32.totalorder %s25, 1
      %p85 = por %p83, %p84
      %p86 = scmp.ne.s32.totalorder %s77, %s78
      %p87 = scmp.eq.s32.totalorder %s25, 0
      %p88 = por %p86, %p87
      %p89 = scmp.ne.s32.totalorder %s77, %s78
      %p90 = scmp.eq.s32.totalorder %s26, 1
      %p91 = por %p89, %p90
      %p93 = scmp.ne.s32.totalorder %s78, %s92
      %p94 = scmp.eq.s32.totalorder %s26, 0
      %p95 = por %p93, %p94
      %s97 = sadd.s32 %s96, 1
      %p100 = scmp.eq.s32.totalorder %s20, 1
      %p101 = scmp.ne.s32.totalorder %s96, %s98
      %p102 = scmp.eq.s32.totalorder %s20, 0
      %p103 = por %p101, %p102
      %p104 = scmp.ne.s32.totalorder %s96, %s98
      %p105 = scmp.eq.s32.totalorder %s25, 1
      %p106 = por %p104, %p105
      %p107 = scmp.ne.s32.totalorder %s98, %s99
      %p108 = scmp.eq.s32.totalorder %s25, 0
      %p109 = por %p107, %p108
      %p110 = scmp.ne.s32.totalorder %s98, %s99
      %p111 = scmp.eq.s32.totalorder %s26, 1
      %p112 = por %p110, %p111
      %p114 = scmp.ne.s32.totalorder %s99, %s113
      %p115 = scmp.eq.s32.totalorder %s26, 0
      %p116 = por %p114, %p115
      %s118 = sadd.s32 %s117, 1
      %p121 = scmp.eq.s32.totalorder %s20, 1
      %p122 = scmp.ne.s32.totalorder %s117, %s119
      %p123 = scmp.eq.s32.totalorder %s20, 0
      %p124 = por %p122, %p123
      %p125 = scmp.ne.s32.totalorder %s117, %s119
      %p126 = scmp.eq.s32.totalorder %s25, 1
      %p127 = por %p125, %p126
      %p128 = scmp.ne.s32.totalorder %s119, %s120
      %p129 = scmp.eq.s32.totalorder %s25, 0
      %p130 = por %p128, %p129
      %p131 = scmp.ne.s32.totalorder %s119, %s120
      %p132 = scmp.eq.s32.totalorder %s26, 1
      %p133 = por %p131, %p132
      %p135 = scmp.ne.s32.totalorder %s120, %s134
      %p136 = scmp.eq.s32.totalorder %s26, 0
      %p137 = por %p135, %p136
      %s139 = sadd.s32 %s138, 1
      %p142 = scmp.eq.s32.totalorder %s20, 1
      %p143 = scmp.ne.s32.totalorder %s138, %s140
      %p144 = scmp.eq.s32.totalorder %s20, 0
      %p145 = por %p143, %p144
      %p146 = scmp.ne.s32.totalorder %s138, %s140
      %p147 = scmp.eq.s32.totalorder %s25, 1
      %p148 = por %p146, %p147
      %p149 = scmp.ne.s32.totalorder %s140, %s141
      %p150 = scmp.eq.s32.totalorder %s25, 0
      %p151 = por %p149, %p150
      %p152 = scmp.ne.s32.totalorder %s140, %s141
      %p153 = scmp.eq.s32.totalorder %s26, 1
      %p154 = por %p152, %p153
      %p156 = scmp.ne.s32.totalorder %s141, %s155
      %p157 = scmp.eq.s32.totalorder %s26, 0
      %p158 = por %p156, %p157
      %s159 = ssub.s32 %s20, %s27
      %p160 = scmp.eq.s32.totalorder %s159, 0
      %s162 = sadd.s32 %s161, 1
      %s163 = scalar_select %p160, %s161, %s162
      %p166 = pneg %p160
      %p167 = scmp.eq.s32.totalorder %s20, 1
      %p168 = por %p166, %p167
      %p169 = scmp.ne.s32.totalorder %s161, %s164
      %p170 = scmp.eq.s32.totalorder %s20, 0
      %p171 = por %p169, %p170
      %p172 = scmp.ne.s32.totalorder %s161, %s164
      %p173 = scmp.eq.s32.totalorder %s25, 1
      %p174 = por %p172, %p173
      %p175 = scmp.ne.s32.totalorder %s164, %s165
      %p176 = scmp.eq.s32.totalorder %s25, 0
      %p177 = por %p175, %p176
      %p178 = scmp.ne.s32.totalorder %s164, %s165
      %p179 = scmp.eq.s32.totalorder %s26, 1
      %p180 = por %p178, %p179
      %p182 = scmp.ne.s32.totalorder %s165, %s181
      %p183 = scmp.eq.s32.totalorder %s26, 0
      %p184 = por %p182, %p183
      %p185 = scmp.le.s32.totalorder 1, %s20
      %p186 = scmp.lt.s32.totalorder %s20, 3
      %p187 = pnand %p185, %p186
      %p188 = pneg %p187
      // Predicated region
      $region9: #{tpu_custom_call.1} parent=5 // pred_check
        _
      $region10: #{tpu_custom_call.1} parent=5 // pred_check_branch
        %190 = sbr.rel (%p187) target = $region12
      $region11: #{tpu_custom_call.1} parent=5 // pred_region
        %s191 = ssub.s32 %s20, 1
        // Predicated region
        $region13: #{tpu_custom_call.1} parent=11 // pred_check
          %p192 = pneg %p67
        $region14: #{tpu_custom_call.1} parent=11 // pred_check_branch
          %194 = sbr.rel (%p192) target = $region16
        $region15: #{tpu_custom_call.1} parent=11 // pred_region
          %196 = vsyncadd [#allocation6], 0
          %s197 = sshll.u32 %s1, 4
          %s198 = int_to_ptr.hbm [resolvable:$true] %s197
          %s199 = sshll.u32 [#allocation5], 4
          %s200 = int_to_ptr.vmem [resolvable:$true] %s199
          %205 = dma.hbm_to_vmem [thread:$0]  %s198, 1024, %s200, [#allocation6], 64, 64, 4
        $region16: #{tpu_custom_call.1} parent=11 // pred_fallthru
          _
        // Predicated region
        $region17: #{tpu_custom_call.1} parent=11 // pred_check
          %p206 = pneg %p88
        $region18: #{tpu_custom_call.1} parent=11 // pred_check_branch
          %208 = sbr.rel (%p206) target = $region20
        $region19: #{tpu_custom_call.1} parent=11 // pred_region
          %210 = vsyncadd [#allocation6], 0
          %s211 = sshll.u32 %s2, 4
          %s212 = int_to_ptr.hbm [resolvable:$true] %s211
          %s213 = sshll.u32 [#allocation7], 4
          %s214 = int_to_ptr.vmem [resolvable:$true] %s213
          %219 = dma.hbm_to_vmem [thread:$0]  %s212, 1024, %s214, [#allocation6], 64, 64, 4
        $region20: #{tpu_custom_call.1} parent=11 // pred_fallthru
          _
        // Predicated region
        $region21: #{tpu_custom_call.1} parent=11 // pred_check
          %p220 = pneg %p109
        $region22: #{tpu_custom_call.1} parent=11 // pred_check_branch
          %222 = sbr.rel (%p220) target = $region24
        $region23: #{tpu_custom_call.1} parent=11 // pred_region
          %224 = vsyncadd [#allocation9], 0
          %s225 = sshll.u32 %s3, 4
          %s226 = int_to_ptr.hbm [resolvable:$true] %s225
          %s227 = sshll.u32 [#allocation8], 4
          %s228 = int_to_ptr.vmem [resolvable:$true] %s227
          %233 = dma.hbm_to_vmem [thread:$0]  %s226, 1024, %s228, [#allocation9], 64, 64, 4
        $region24: #{tpu_custom_call.1} parent=11 // pred_fallthru
          _
        // Predicated region
        $region25: #{tpu_custom_call.1} parent=11 // pred_check
          %p234 = pneg %p130
        $region26: #{tpu_custom_call.1} parent=11 // pred_check_branch
          %236 = sbr.rel (%p234) target = $region28
        $region27: #{tpu_custom_call.1} parent=11 // pred_region
          %238 = vsyncadd [#allocation9], 0
          %s239 = sshll.u32 %s4, 4
          %s240 = int_to_ptr.hbm [resolvable:$true] %s239
          %s241 = sshll.u32 [#allocation10], 4
          %s242 = int_to_ptr.vmem [resolvable:$true] %s241
          %247 = dma.hbm_to_vmem [thread:$0]  %s240, 1024, %s242, [#allocation9], 64, 64, 4
        $region28: #{tpu_custom_call.1} parent=11 // pred_fallthru
          _
        // Predicated region
        $region29: #{tpu_custom_call.1} parent=11 // pred_check
          %p248 = pneg %p151
        $region30: #{tpu_custom_call.1} parent=11 // pred_check_branch
          %250 = sbr.rel (%p248) target = $region32
        $region31: #{tpu_custom_call.1} parent=11 // pred_region
          _
        $region32: #{tpu_custom_call.1} parent=11 // pred_fallthru
          _
      $region12: #{tpu_custom_call.1} parent=5 // pred_fallthru
        _
      %p251 = scmp.lt.s32.totalorder %s20, 2
      // Predicated region
      $region33: #{tpu_custom_call.1} parent=5 // pred_check
        %p252 = pneg %p251
      $region34: #{tpu_custom_call.1} parent=5 // pred_check_branch
        %254 = sbr.rel (%p252) target = $region36
      $region35: #{tpu_custom_call.1} parent=5 // pred_region
        // Predicated region
        $region37: #{tpu_custom_call.1} parent=35 // pred_check
          %p255 = pneg %p40
        $region38: #{tpu_custom_call.1} parent=35 // pred_check_branch
          %257 = sbr.rel (%p255) target = $region40
        $region39: #{tpu_custom_call.1} parent=35 // pred_region
          %s258 = sand.u32 %s30, 1
          %s259 = scalar_lea.sflag [#allocation3], %s258
          %s260 = sand.u32 %s30, 1
          %s261 = smul.addr %s260, 64
          %s262 = scalar_lea.vmem [#allocation2], %s261
          %s263 = smul.u32 16, %s20
          %265 = vsyncadd %s259, 0
          %s266 = smul.addr %s263, 4
          %s267 = scalar_lea.hbm %s0, %s266
          %s268 = sshll.u32 %s267, 4
          %s269 = int_to_ptr.hbm [resolvable:$true] %s268
          %s270 = sshll.u32 %s262, 4
          %s271 = int_to_ptr.vmem [resolvable:$true] %s270
          %276 = dma.hbm_to_vmem [thread:$0]  %s269, 1024, %s271, %s259, 64, 64, 4
        $region40: #{tpu_custom_call.1} parent=35 // pred_fallthru
          _
      $region36: #{tpu_custom_call.1} parent=5 // pred_fallthru
        _
      %p277 = scmp.le.s32.totalorder 1, %s20
      %p278 = scmp.lt.s32.totalorder %s20, 3
      %p279 = pnand %p277, %p278
      %p280 = pneg %p279
      // Predicated region
      $region41: #{tpu_custom_call.1} parent=5 // pred_check
        _
      $region42: #{tpu_custom_call.1} parent=5 // pred_check_branch
        %282 = sbr.rel (%p279) target = $region44
      $region43: #{tpu_custom_call.1} parent=5 // pred_region
        %s283 = ssub.s32 %s20, 1
        %s284 = sand.u32 %s33, 1
        %s285 = scalar_lea.sflag [#allocation3], %s284
        %s286 = sand.u32 %s33, 1
        %s287 = smul.addr %s286, 64
        %s288 = scalar_lea.vmem [#allocation2], %s287
        // Predicated region
        $region45: #{tpu_custom_call.1} parent=43 // pred_check
          %p289 = pneg %p46
        $region46: #{tpu_custom_call.1} parent=43 // pred_check_branch
          %291 = sbr.rel (%p289) target = $region48
        $region47: #{tpu_custom_call.1} parent=43 // pred_region
          %293 = dma.done %s285, 1024
        $region48: #{tpu_custom_call.1} parent=43 // pred_fallthru
          _
        // Predicated region
        $region49: #{tpu_custom_call.1} parent=43 // pred_check
          %p294 = pneg %p67
        $region50: #{tpu_custom_call.1} parent=43 // pred_check_branch
          %296 = sbr.rel (%p294) target = $region52
        $region51: #{tpu_custom_call.1} parent=43 // pred_region
          %298 = dma.done [#allocation6], 1024
        $region52: #{tpu_custom_call.1} parent=43 // pred_fallthru
          _
        // Predicated region
        $region53: #{tpu_custom_call.1} parent=43 // pred_check
          %p299 = pneg %p88
        $region54: #{tpu_custom_call.1} parent=43 // pred_check_branch
          %301 = sbr.rel (%p299) target = $region56
        $region55: #{tpu_custom_call.1} parent=43 // pred_region
          %303 = dma.done [#allocation6], 1024
        $region56: #{tpu_custom_call.1} parent=43 // pred_fallthru
          _
        // Predicated region
        $region57: #{tpu_custom_call.1} parent=43 // pred_check
          %p304 = pneg %p109
        $region58: #{tpu_custom_call.1} parent=43 // pred_check_branch
          %306 = sbr.rel (%p304) target = $region60
        $region59: #{tpu_custom_call.1} parent=43 // pred_region
          %308 = dma.done [#allocation9], 1024
        $region60: #{tpu_custom_call.1} parent=43 // pred_fallthru
          _
        // Predicated region
        $region61: #{tpu_custom_call.1} parent=43 // pred_check
          %p309 = pneg %p130
        $region62: #{tpu_custom_call.1} parent=43 // pred_check_branch
          %311 = sbr.rel (%p309) target = $region64
        $region63: #{tpu_custom_call.1} parent=43 // pred_region
          %313 = dma.done [#allocation9], 1024
        $region64: #{tpu_custom_call.1} parent=43 // pred_fallthru
          _
        %s314 = sand.u32 %s33, 1
        %s315 = scalar_lea.sflag [#allocation3], %s314
        %s316 = sand.u32 %s33, 1
        %s317 = smul.addr %s316, 64
        %s318 = scalar_lea.vmem [#allocation2], %s317
        %p319 = pneg %p46
        %p320 = pneg %p43
        %p321 = pneg %p67
        %p322 = pneg %p64
        %p323 = pneg %p88
        %p324 = pneg %p85
        %p325 = pneg %p109
        %p326 = pneg %p106
        %p327 = pneg %p130
        %p328 = pneg %p127
        %p329 = pneg %p151
        %p330 = pneg %p148
        %p331 = pneg %p177
        %p332 = pneg %p174
        %s333 = sand.u32 %s164, 1
        %s334 = scalar_lea.sflag [#allocation4], %s333
        %s335 = sand.u32 %s164, 1
        %s336 = smul.addr %s335, 128
        %s337 = scalar_lea.vmem [#allocation11], %s336
        %s338 = smul.u32 16, %s25
        %s339 = smul.u32 16, %s25
        %v340 = vld [vmem:[%s288] sm:$0xf]
        %v341 = vld [vmem:[%s288 + $0x4] sm:$0xf]
        %v342 = vld [vmem:[%s288 + $0x8] sm:$0xf]
        %v343 = vld [vmem:[%s288 + $0xc] sm:$0xf]
        %v344 = vld [vmem:[%s288 + $0x10] sm:$0xf]
        %v345 = vld [vmem:[%s288 + $0x14] sm:$0xf]
        %v346 = vld [vmem:[%s288 + $0x18] sm:$0xf]
        %v347 = vld [vmem:[%s288 + $0x1c] sm:$0xf]
        %v348 = vld [vmem:[%s288 + $0x20] sm:$0xf]
        %v349 = vld [vmem:[%s288 + $0x24] sm:$0xf]
        %v350 = vld [vmem:[%s288 + $0x28] sm:$0xf]
        %v351 = vld [vmem:[%s288 + $0x2c] sm:$0xf]
        %v352 = vld [vmem:[%s288 + $0x30] sm:$0xf]
        %v353 = vld [vmem:[%s288 + $0x34] sm:$0xf]
        %v354 = vld [vmem:[%s288 + $0x38] sm:$0xf]
        %v355 = vld [vmem:[%s288 + $0x3c] sm:$0xf]
        %v356 = vld [vmem:[#allocation5] sm:$0xf]
        %v357 = vld [vmem:[#allocation5 + $0x4] sm:$0xf]
        %v358 = vld [vmem:[#allocation5 + $0x8] sm:$0xf]
        %v359 = vld [vmem:[#allocation5 + $0xc] sm:$0xf]
        %v360 = vld [vmem:[#allocation5 + $0x10] sm:$0xf]
        %v361 = vld [vmem:[#allocation5 + $0x14] sm:$0xf]
        %v362 = vld [vmem:[#allocation5 + $0x18] sm:$0xf]
        %v363 = vld [vmem:[#allocation5 + $0x1c] sm:$0xf]
        %v364 = vld [vmem:[#allocation5 + $0x20] sm:$0xf]
        %v365 = vld [vmem:[#allocation5 + $0x24] sm:$0xf]
        %v366 = vld [vmem:[#allocation5 + $0x28] sm:$0xf]
        %v367 = vld [vmem:[#allocation5 + $0x2c] sm:$0xf]
        %v368 = vld [vmem:[#allocation5 + $0x30] sm:$0xf]
        %v369 = vld [vmem:[#allocation5 + $0x34] sm:$0xf]
        %v370 = vld [vmem:[#allocation5 + $0x38] sm:$0xf]
        %v371 = vld [vmem:[#allocation5 + $0x3c] sm:$0xf]
        %v388 = vunpack.c.l.b16 %v340
        %v389 = vunpack.c.l.b16 %v341
        %v390 = vunpack.c.l.b16 %v342
        %v391 = vunpack.c.l.b16 %v343
        %v392 = vunpack.c.l.b16 %v344
        %v393 = vunpack.c.l.b16 %v345
        %v394 = vunpack.c.l.b16 %v346
        %v395 = vunpack.c.l.b16 %v347
        %v396 = vunpack.c.l.b16 %v348
        %v397 = vunpack.c.l.b16 %v349
        %v398 = vunpack.c.l.b16 %v350
        %v399 = vunpack.c.l.b16 %v351
        %v400 = vunpack.c.l.b16 %v352
        %v401 = vunpack.c.l.b16 %v353
        %v402 = vunpack.c.l.b16 %v354
        %v403 = vunpack.c.l.b16 %v355
        %v404 = vpack.c.b16 %v389, %v388
        %v405 = vpack.c.b16 %v391, %v390
        %v406 = vpack.c.b16 %v393, %v392
        %v407 = vpack.c.b16 %v395, %v394
        %v408 = vpack.c.b16 %v397, %v396
        %v409 = vpack.c.b16 %v399, %v398
        %v410 = vpack.c.b16 %v401, %v400
        %v411 = vpack.c.b16 %v403, %v402
        %v436 = vunpack.c.l.b16 %v356
        %v437 = vunpack.c.l.b16 %v357
        %v438 = vunpack.c.l.b16 %v358
        %v439 = vunpack.c.l.b16 %v359
        %v440 = vunpack.c.l.b16 %v360
        %v441 = vunpack.c.l.b16 %v361
        %v442 = vunpack.c.l.b16 %v362
        %v443 = vunpack.c.l.b16 %v363
        %v444 = vunpack.c.l.b16 %v364
        %v445 = vunpack.c.l.b16 %v365
        %v446 = vunpack.c.l.b16 %v366
        %v447 = vunpack.c.l.b16 %v367
        %v448 = vunpack.c.l.b16 %v368
        %v449 = vunpack.c.l.b16 %v369
        %v450 = vunpack.c.l.b16 %v370
        %v451 = vunpack.c.l.b16 %v371
        %v452 = vpack.c.b16 %v437, %v436
        %v453 = vpack.c.b16 %v439, %v438
        %v454 = vpack.c.b16 %v441, %v440
        %v455 = vpack.c.b16 %v443, %v442
        %v456 = vpack.c.b16 %v445, %v444
        %v457 = vpack.c.b16 %v447, %v446
        %v458 = vpack.c.b16 %v449, %v448
        %v459 = vpack.c.b16 %v451, %v450
        %468 = vmatpush.bf16.msra.mxu0 %v459
        %469 = vmatpush.bf16.msra.mxu0 %v458
        %470 = vmatpush.bf16.msra.mxu0 %v457
        %471 = vmatpush.bf16.msra.mxu0 %v456
        %472 = vmatpush.bf16.msra.mxu0 %v455
        %473 = vmatpush.bf16.msra.mxu0 %v454
        %474 = vmatpush.bf16.msra.mxu0 %v453
        %475 = vmatpush.bf16.msra.mxu0 %v452
        %476 = vmatmul.bf16.gmra.mxu0 %v404
        %v477 = vpop.f32.mrf.mxu0
        %v478 = vadd.f32 0.0, %v477
        %v479 = vpop.f32.mrf.mxu0
        %v480 = vadd.f32 0.0, %v479
        %481 = vmatmul.bf16.gmra.mxu0 %v405
        %v482 = vpop.f32.mrf.mxu0
        %v483 = vadd.f32 0.0, %v482
        %v484 = vpop.f32.mrf.mxu0
        %v485 = vadd.f32 0.0, %v484
        %486 = vmatmul.bf16.gmra.mxu0 %v406
        %v487 = vpop.f32.mrf.mxu0
        %v488 = vadd.f32 0.0, %v487
        %v489 = vpop.f32.mrf.mxu0
        %v490 = vadd.f32 0.0, %v489
        %491 = vmatmul.bf16.gmra.mxu0 %v407
        %v492 = vpop.f32.mrf.mxu0
        %v493 = vadd.f32 0.0, %v492
        %v494 = vpop.f32.mrf.mxu0
        %v495 = vadd.f32 0.0, %v494
        %496 = vmatmul.bf16.gmra.mxu0 %v408
        %v497 = vpop.f32.mrf.mxu0
        %v498 = vadd.f32 0.0, %v497
        %v499 = vpop.f32.mrf.mxu0
        %v500 = vadd.f32 0.0, %v499
        %501 = vmatmul.bf16.gmra.mxu0 %v409
        %v502 = vpop.f32.mrf.mxu0
        %v503 = vadd.f32 0.0, %v502
        %v504 = vpop.f32.mrf.mxu0
        %v505 = vadd.f32 0.0, %v504
        %506 = vmatmul.bf16.gmra.mxu0 %v410
        %v507 = vpop.f32.mrf.mxu0
        %v508 = vadd.f32 0.0, %v507
        %v509 = vpop.f32.mrf.mxu0
        %v510 = vadd.f32 0.0, %v509
        %511 = vmatmul.bf16.gmra.mxu0 %v411
        %v512 = vpop.f32.mrf.mxu0
        %v513 = vadd.f32 0.0, %v512
        %v514 = vpop.f32.mrf.mxu0
        %v515 = vadd.f32 0.0, %v514
        %516 = vdwg.mxu0
        %v517 = vld [vmem:[%s5] sm:$0x1]
        %v518 = vpack.c.bf16 %v517, %v517
        %v519 = vpack.c.bf16 %v478, %v478
        %v520 = vpack.c.bf16 %v480, %v480
        %v521 = vpack.c.bf16 %v483, %v483
        %v522 = vpack.c.bf16 %v485, %v485
        %v523 = vpack.c.bf16 %v488, %v488
        %v524 = vpack.c.bf16 %v490, %v490
        %v525 = vpack.c.bf16 %v493, %v493
        %v526 = vpack.c.bf16 %v495, %v495
        %v527 = vpack.c.bf16 %v498, %v498
        %v528 = vpack.c.bf16 %v500, %v500
        %v529 = vpack.c.bf16 %v503, %v503
        %v530 = vpack.c.bf16 %v505, %v505
        %v531 = vpack.c.bf16 %v508, %v508
        %v532 = vpack.c.bf16 %v510, %v510
        %v533 = vpack.c.bf16 %v513, %v513
        %v534 = vpack.c.bf16 %v515, %v515
        %v536 = vpack.i.b16 %v518, %v518
        %v538 = vperm.slane %v536, 0
        %v539 = vunpack.c.l.bf16 %v519
        %v540 = vunpack.c.l.bf16 %v520
        %v541 = vunpack.c.l.bf16 %v521
        %v542 = vunpack.c.l.bf16 %v522
        %v543 = vunpack.c.l.bf16 %v523
        %v544 = vunpack.c.l.bf16 %v524
        %v545 = vunpack.c.l.bf16 %v525
        %v546 = vunpack.c.l.bf16 %v526
        %v547 = vunpack.c.l.bf16 %v527
        %v548 = vunpack.c.l.bf16 %v528
        %v549 = vunpack.c.l.bf16 %v529
        %v550 = vunpack.c.l.bf16 %v530
        %v551 = vunpack.c.l.bf16 %v531
        %v552 = vunpack.c.l.bf16 %v532
        %v553 = vunpack.c.l.bf16 %v533
        %v554 = vunpack.c.l.bf16 %v534
        %v555 = vunpack.c.l.bf16 %v538
        %v556 = vadd.f32 %v539, %v555
        %v557 = vadd.f32 %v540, %v555
        %v558 = vadd.f32 %v541, %v555
        %v559 = vadd.f32 %v542, %v555
        %v560 = vadd.f32 %v543, %v555
        %v561 = vadd.f32 %v544, %v555
        %v562 = vadd.f32 %v545, %v555
        %v563 = vadd.f32 %v546, %v555
        %v564 = vadd.f32 %v547, %v555
        %v565 = vadd.f32 %v548, %v555
        %v566 = vadd.f32 %v549, %v555
        %v567 = vadd.f32 %v550, %v555
        %v568 = vadd.f32 %v551, %v555
        %v569 = vadd.f32 %v552, %v555
        %v570 = vadd.f32 %v553, %v555
        %v571 = vadd.f32 %v554, %v555
        %v572 = vpack.c.bf16 %v556, %v556
        %v573 = vpack.c.bf16 %v557, %v557
        %v574 = vpack.c.bf16 %v558, %v558
        %v575 = vpack.c.bf16 %v559, %v559
        %v576 = vpack.c.bf16 %v560, %v560
        %v577 = vpack.c.bf16 %v561, %v561
        %v578 = vpack.c.bf16 %v562, %v562
        %v579 = vpack.c.bf16 %v563, %v563
        %v580 = vpack.c.bf16 %v564, %v564
        %v581 = vpack.c.bf16 %v565, %v565
        %v582 = vpack.c.bf16 %v566, %v566
        %v583 = vpack.c.bf16 %v567, %v567
        %v584 = vpack.c.bf16 %v568, %v568
        %v585 = vpack.c.bf16 %v569, %v569
        %v586 = vpack.c.bf16 %v570, %v570
        %v587 = vpack.c.bf16 %v571, %v571
        %v588 = vunpack.c.l.bf16 %v572
        %v589 = vunpack.c.l.bf16 %v573
        %v590 = vunpack.c.l.bf16 %v574
        %v591 = vunpack.c.l.bf16 %v575
        %v592 = vunpack.c.l.bf16 %v576
        %v593 = vunpack.c.l.bf16 %v577
        %v594 = vunpack.c.l.bf16 %v578
        %v595 = vunpack.c.l.bf16 %v579
        %v596 = vunpack.c.l.bf16 %v580
        %v597 = vunpack.c.l.bf16 %v581
        %v598 = vunpack.c.l.bf16 %v582
        %v599 = vunpack.c.l.bf16 %v583
        %v600 = vunpack.c.l.bf16 %v584
        %v601 = vunpack.c.l.bf16 %v585
        %v602 = vunpack.c.l.bf16 %v586
        %v603 = vunpack.c.l.bf16 %v587
        %v604 = vmax.f32 %v588, 0.0
        %v605 = vmax.f32 %v589, 0.0
        %v606 = vmax.f32 %v590, 0.0
        %v607 = vmax.f32 %v591, 0.0
        %v608 = vmax.f32 %v592, 0.0
        %v609 = vmax.f32 %v593, 0.0
        %v610 = vmax.f32 %v594, 0.0
        %v611 = vmax.f32 %v595, 0.0
        %v612 = vmax.f32 %v596, 0.0
        %v613 = vmax.f32 %v597, 0.0
        %v614 = vmax.f32 %v598, 0.0
        %v615 = vmax.f32 %v599, 0.0
        %v616 = vmax.f32 %v600, 0.0
        %v617 = vmax.f32 %v601, 0.0
        %v618 = vmax.f32 %v602, 0.0
        %v619 = vmax.f32 %v603, 0.0
        %v620 = vpack.c.bf16 %v605, %v604
        %v621 = vpack.c.bf16 %v607, %v606
        %v622 = vpack.c.bf16 %v609, %v608
        %v623 = vpack.c.bf16 %v611, %v610
        %v624 = vpack.c.bf16 %v613, %v612
        %v625 = vpack.c.bf16 %v615, %v614
        %v626 = vpack.c.bf16 %v617, %v616
        %v627 = vpack.c.bf16 %v619, %v618
        %v628 = vld [vmem:[#allocation7] sm:$0xf]
        %v629 = vld [vmem:[#allocation7 + $0x4] sm:$0xf]
        %v630 = vld [vmem:[#allocation7 + $0x8] sm:$0xf]
        %v631 = vld [vmem:[#allocation7 + $0xc] sm:$0xf]
        %v632 = vld [vmem:[#allocation7 + $0x10] sm:$0xf]
        %v633 = vld [vmem:[#allocation7 + $0x14] sm:$0xf]
        %v634 = vld [vmem:[#allocation7 + $0x18] sm:$0xf]
        %v635 = vld [vmem:[#allocation7 + $0x1c] sm:$0xf]
        %v636 = vld [vmem:[#allocation7 + $0x20] sm:$0xf]
        %v637 = vld [vmem:[#allocation7 + $0x24] sm:$0xf]
        %v638 = vld [vmem:[#allocation7 + $0x28] sm:$0xf]
        %v639 = vld [vmem:[#allocation7 + $0x2c] sm:$0xf]
        %v640 = vld [vmem:[#allocation7 + $0x30] sm:$0xf]
        %v641 = vld [vmem:[#allocation7 + $0x34] sm:$0xf]
        %v642 = vld [vmem:[#allocation7 + $0x38] sm:$0xf]
        %v643 = vld [vmem:[#allocation7 + $0x3c] sm:$0xf]
        %v660 = vunpack.c.l.b16 %v628
        %v661 = vunpack.c.l.b16 %v629
        %v662 = vunpack.c.l.b16 %v630
        %v663 = vunpack.c.l.b16 %v631
        %v664 = vunpack.c.l.b16 %v632
        %v665 = vunpack.c.l.b16 %v633
        %v666 = vunpack.c.l.b16 %v634
        %v667 = vunpack.c.l.b16 %v635
        %v668 = vunpack.c.l.b16 %v636
        %v669 = vunpack.c.l.b16 %v637
        %v670 = vunpack.c.l.b16 %v638
        %v671 = vunpack.c.l.b16 %v639
        %v672 = vunpack.c.l.b16 %v640
        %v673 = vunpack.c.l.b16 %v641
        %v674 = vunpack.c.l.b16 %v642
        %v675 = vunpack.c.l.b16 %v643
        %v676 = vpack.c.b16 %v661, %v660
        %v677 = vpack.c.b16 %v663, %v662
        %v678 = vpack.c.b16 %v665, %v664
        %v679 = vpack.c.b16 %v667, %v666
        %v680 = vpack.c.b16 %v669, %v668
        %v681 = vpack.c.b16 %v671, %v670
        %v682 = vpack.c.b16 %v673, %v672
        %v683 = vpack.c.b16 %v675, %v674
        %692 = vmatpush.bf16.msra.mxu0 %v683
        %693 = vmatpush.bf16.msra.mxu0 %v682
        %694 = vmatpush.bf16.msra.mxu0 %v681
        %695 = vmatpush.bf16.msra.mxu0 %v680
        %696 = vmatpush.bf16.msra.mxu0 %v679
        %697 = vmatpush.bf16.msra.mxu0 %v678
        %698 = vmatpush.bf16.msra.mxu0 %v677
        %699 = vmatpush.bf16.msra.mxu0 %v676
        %700 = vmatmul.bf16.gmra.mxu0 %v620
        %v701 = vpop.f32.mrf.mxu0
        %v702 = vadd.f32 0.0, %v701
        %v703 = vpop.f32.mrf.mxu0
        %v704 = vadd.f32 0.0, %v703
        %705 = vmatmul.bf16.gmra.mxu0 %v621
        %v706 = vpop.f32.mrf.mxu0
        %v707 = vadd.f32 0.0, %v706
        %v708 = vpop.f32.mrf.mxu0
        %v709 = vadd.f32 0.0, %v708
        %710 = vmatmul.bf16.gmra.mxu0 %v622
        %v711 = vpop.f32.mrf.mxu0
        %v712 = vadd.f32 0.0, %v711
        %v713 = vpop.f32.mrf.mxu0
        %v714 = vadd.f32 0.0, %v713
        %715 = vmatmul.bf16.gmra.mxu0 %v623
        %v716 = vpop.f32.mrf.mxu0
        %v717 = vadd.f32 0.0, %v716
        %v718 = vpop.f32.mrf.mxu0
        %v719 = vadd.f32 0.0, %v718
        %720 = vmatmul.bf16.gmra.mxu0 %v624
        %v721 = vpop.f32.mrf.mxu0
        %v722 = vadd.f32 0.0, %v721
        %v723 = vpop.f32.mrf.mxu0
        %v724 = vadd.f32 0.0, %v723
        %725 = vmatmul.bf16.gmra.mxu0 %v625
        %v726 = vpop.f32.mrf.mxu0
        %v727 = vadd.f32 0.0, %v726
        %v728 = vpop.f32.mrf.mxu0
        %v729 = vadd.f32 0.0, %v728
        %730 = vmatmul.bf16.gmra.mxu0 %v626
        %v731 = vpop.f32.mrf.mxu0
        %v732 = vadd.f32 0.0, %v731
        %v733 = vpop.f32.mrf.mxu0
        %v734 = vadd.f32 0.0, %v733
        %735 = vmatmul.bf16.gmra.mxu0 %v627
        %v736 = vpop.f32.mrf.mxu0
        %v737 = vadd.f32 0.0, %v736
        %v738 = vpop.f32.mrf.mxu0
        %v739 = vadd.f32 0.0, %v738
        %740 = vdwg.mxu0
        %v741 = vld [vmem:[%s5 + $0x1] sm:$0x1]
        %v742 = vpack.c.bf16 %v741, %v741
        %v743 = vpack.c.bf16 %v702, %v702
        %v744 = vpack.c.bf16 %v704, %v704
        %v745 = vpack.c.bf16 %v707, %v707
        %v746 = vpack.c.bf16 %v709, %v709
        %v747 = vpack.c.bf16 %v712, %v712
        %v748 = vpack.c.bf16 %v714, %v714
        %v749 = vpack.c.bf16 %v717, %v717
        %v750 = vpack.c.bf16 %v719, %v719
        %v751 = vpack.c.bf16 %v722, %v722
        %v752 = vpack.c.bf16 %v724, %v724
        %v753 = vpack.c.bf16 %v727, %v727
        %v754 = vpack.c.bf16 %v729, %v729
        %v755 = vpack.c.bf16 %v732, %v732
        %v756 = vpack.c.bf16 %v734, %v734
        %v757 = vpack.c.bf16 %v737, %v737
        %v758 = vpack.c.bf16 %v739, %v739
        %v760 = vpack.i.b16 %v742, %v742
        %v762 = vperm.slane %v760, 0
        %v763 = vunpack.c.l.bf16 %v743
        %v764 = vunpack.c.l.bf16 %v744
        %v765 = vunpack.c.l.bf16 %v745
        %v766 = vunpack.c.l.bf16 %v746
        %v767 = vunpack.c.l.bf16 %v747
        %v768 = vunpack.c.l.bf16 %v748
        %v769 = vunpack.c.l.bf16 %v749
        %v770 = vunpack.c.l.bf16 %v750
        %v771 = vunpack.c.l.bf16 %v751
        %v772 = vunpack.c.l.bf16 %v752
        %v773 = vunpack.c.l.bf16 %v753
        %v774 = vunpack.c.l.bf16 %v754
        %v775 = vunpack.c.l.bf16 %v755
        %v776 = vunpack.c.l.bf16 %v756
        %v777 = vunpack.c.l.bf16 %v757
        %v778 = vunpack.c.l.bf16 %v758
        %v779 = vunpack.c.l.bf16 %v762
        %v780 = vadd.f32 %v763, %v779
        %v781 = vadd.f32 %v764, %v779
        %v782 = vadd.f32 %v765, %v779
        %v783 = vadd.f32 %v766, %v779
        %v784 = vadd.f32 %v767, %v779
        %v785 = vadd.f32 %v768, %v779
        %v786 = vadd.f32 %v769, %v779
        %v787 = vadd.f32 %v770, %v779
        %v788 = vadd.f32 %v771, %v779
        %v789 = vadd.f32 %v772, %v779
        %v790 = vadd.f32 %v773, %v779
        %v791 = vadd.f32 %v774, %v779
        %v792 = vadd.f32 %v775, %v779
        %v793 = vadd.f32 %v776, %v779
        %v794 = vadd.f32 %v777, %v779
        %v795 = vadd.f32 %v778, %v779
        %v796 = vpack.c.bf16 %v780, %v780
        %v797 = vpack.c.bf16 %v781, %v781
        %v798 = vpack.c.bf16 %v782, %v782
        %v799 = vpack.c.bf16 %v783, %v783
        %v800 = vpack.c.bf16 %v784, %v784
        %v801 = vpack.c.bf16 %v785, %v785
        %v802 = vpack.c.bf16 %v786, %v786
        %v803 = vpack.c.bf16 %v787, %v787
        %v804 = vpack.c.bf16 %v788, %v788
        %v805 = vpack.c.bf16 %v789, %v789
        %v806 = vpack.c.bf16 %v790, %v790
        %v807 = vpack.c.bf16 %v791, %v791
        %v808 = vpack.c.bf16 %v792, %v792
        %v809 = vpack.c.bf16 %v793, %v793
        %v810 = vpack.c.bf16 %v794, %v794
        %v811 = vpack.c.bf16 %v795, %v795
        %v812 = vunpack.c.l.bf16 %v796
        %v813 = vunpack.c.l.bf16 %v797
        %v814 = vunpack.c.l.bf16 %v798
        %v815 = vunpack.c.l.bf16 %v799
        %v816 = vunpack.c.l.bf16 %v800
        %v817 = vunpack.c.l.bf16 %v801
        %v818 = vunpack.c.l.bf16 %v802
        %v819 = vunpack.c.l.bf16 %v803
        %v820 = vunpack.c.l.bf16 %v804
        %v821 = vunpack.c.l.bf16 %v805
        %v822 = vunpack.c.l.bf16 %v806
        %v823 = vunpack.c.l.bf16 %v807
        %v824 = vunpack.c.l.bf16 %v808
        %v825 = vunpack.c.l.bf16 %v809
        %v826 = vunpack.c.l.bf16 %v810
        %v827 = vunpack.c.l.bf16 %v811
        %v828 = vmax.f32 %v812, 0.0
        %v829 = vmax.f32 %v813, 0.0
        %v830 = vmax.f32 %v814, 0.0
        %v831 = vmax.f32 %v815, 0.0
        %v832 = vmax.f32 %v816, 0.0
        %v833 = vmax.f32 %v817, 0.0
        %v834 = vmax.f32 %v818, 0.0
        %v835 = vmax.f32 %v819, 0.0
        %v836 = vmax.f32 %v820, 0.0
        %v837 = vmax.f32 %v821, 0.0
        %v838 = vmax.f32 %v822, 0.0
        %v839 = vmax.f32 %v823, 0.0
        %v840 = vmax.f32 %v824, 0.0
        %v841 = vmax.f32 %v825, 0.0
        %v842 = vmax.f32 %v826, 0.0
        %v843 = vmax.f32 %v827, 0.0
        %v844 = vpack.c.bf16 %v829, %v828
        %v845 = vpack.c.bf16 %v831, %v830
        %v846 = vpack.c.bf16 %v833, %v832
        %v847 = vpack.c.bf16 %v835, %v834
        %v848 = vpack.c.bf16 %v837, %v836
        %v849 = vpack.c.bf16 %v839, %v838
        %v850 = vpack.c.bf16 %v841, %v840
        %v851 = vpack.c.bf16 %v843, %v842
        %v852 = vld [vmem:[#allocation8] sm:$0xf]
        %v853 = vld [vmem:[#allocation8 + $0x4] sm:$0xf]
        %v854 = vld [vmem:[#allocation8 + $0x8] sm:$0xf]
        %v855 = vld [vmem:[#allocation8 + $0xc] sm:$0xf]
        %v856 = vld [vmem:[#allocation8 + $0x10] sm:$0xf]
        %v857 = vld [vmem:[#allocation8 + $0x14] sm:$0xf]
        %v858 = vld [vmem:[#allocation8 + $0x18] sm:$0xf]
        %v859 = vld [vmem:[#allocation8 + $0x1c] sm:$0xf]
        %v860 = vld [vmem:[#allocation8 + $0x20] sm:$0xf]
        %v861 = vld [vmem:[#allocation8 + $0x24] sm:$0xf]
        %v862 = vld [vmem:[#allocation8 + $0x28] sm:$0xf]
        %v863 = vld [vmem:[#allocation8 + $0x2c] sm:$0xf]
        %v864 = vld [vmem:[#allocation8 + $0x30] sm:$0xf]
        %v865 = vld [vmem:[#allocation8 + $0x34] sm:$0xf]
        %v866 = vld [vmem:[#allocation8 + $0x38] sm:$0xf]
        %v867 = vld [vmem:[#allocation8 + $0x3c] sm:$0xf]
        %v884 = vunpack.c.l.b16 %v852
        %v885 = vunpack.c.l.b16 %v853
        %v886 = vunpack.c.l.b16 %v854
        %v887 = vunpack.c.l.b16 %v855
        %v888 = vunpack.c.l.b16 %v856
        %v889 = vunpack.c.l.b16 %v857
        %v890 = vunpack.c.l.b16 %v858
        %v891 = vunpack.c.l.b16 %v859
        %v892 = vunpack.c.l.b16 %v860
        %v893 = vunpack.c.l.b16 %v861
        %v894 = vunpack.c.l.b16 %v862
        %v895 = vunpack.c.l.b16 %v863
        %v896 = vunpack.c.l.b16 %v864
        %v897 = vunpack.c.l.b16 %v865
        %v898 = vunpack.c.l.b16 %v866
        %v899 = vunpack.c.l.b16 %v867
        %v900 = vpack.c.b16 %v885, %v884
        %v901 = vpack.c.b16 %v887, %v886
        %v902 = vpack.c.b16 %v889, %v888
        %v903 = vpack.c.b16 %v891, %v890
        %v904 = vpack.c.b16 %v893, %v892
        %v905 = vpack.c.b16 %v895, %v894
        %v906 = vpack.c.b16 %v897, %v896
        %v907 = vpack.c.b16 %v899, %v898
        %916 = vmatpush.bf16.msra.mxu0 %v907
        %917 = vmatpush.bf16.msra.mxu0 %v906
        %918 = vmatpush.bf16.msra.mxu0 %v905
        %919 = vmatpush.bf16.msra.mxu0 %v904
        %920 = vmatpush.bf16.msra.mxu0 %v903
        %921 = vmatpush.bf16.msra.mxu0 %v902
        %922 = vmatpush.bf16.msra.mxu0 %v901
        %923 = vmatpush.bf16.msra.mxu0 %v900
        %924 = vmatmul.bf16.gmra.mxu0 %v844
        %v925 = vpop.f32.mrf.mxu0
        %v926 = vadd.f32 0.0, %v925
        %v927 = vpop.f32.mrf.mxu0
        %v928 = vadd.f32 0.0, %v927
        %929 = vmatmul.bf16.gmra.mxu0 %v845
        %v930 = vpop.f32.mrf.mxu0
        %v931 = vadd.f32 0.0, %v930
        %v932 = vpop.f32.mrf.mxu0
        %v933 = vadd.f32 0.0, %v932
        %934 = vmatmul.bf16.gmra.mxu0 %v846
        %v935 = vpop.f32.mrf.mxu0
        %v936 = vadd.f32 0.0, %v935
        %v937 = vpop.f32.mrf.mxu0
        %v938 = vadd.f32 0.0, %v937
        %939 = vmatmul.bf16.gmra.mxu0 %v847
        %v940 = vpop.f32.mrf.mxu0
        %v941 = vadd.f32 0.0, %v940
        %v942 = vpop.f32.mrf.mxu0
        %v943 = vadd.f32 0.0, %v942
        %944 = vmatmul.bf16.gmra.mxu0 %v848
        %v945 = vpop.f32.mrf.mxu0
        %v946 = vadd.f32 0.0, %v945
        %v947 = vpop.f32.mrf.mxu0
        %v948 = vadd.f32 0.0, %v947
        %949 = vmatmul.bf16.gmra.mxu0 %v849
        %v950 = vpop.f32.mrf.mxu0
        %v951 = vadd.f32 0.0, %v950
        %v952 = vpop.f32.mrf.mxu0
        %v953 = vadd.f32 0.0, %v952
        %954 = vmatmul.bf16.gmra.mxu0 %v850
        %v955 = vpop.f32.mrf.mxu0
        %v956 = vadd.f32 0.0, %v955
        %v957 = vpop.f32.mrf.mxu0
        %v958 = vadd.f32 0.0, %v957
        %959 = vmatmul.bf16.gmra.mxu0 %v851
        %v960 = vpop.f32.mrf.mxu0
        %v961 = vadd.f32 0.0, %v960
        %v962 = vpop.f32.mrf.mxu0
        %v963 = vadd.f32 0.0, %v962
        %964 = vdwg.mxu0
        %v965 = vld [vmem:[%s5 + $0x2] sm:$0x1]
        %v966 = vpack.c.bf16 %v965, %v965
        %v967 = vpack.c.bf16 %v926, %v926
        %v968 = vpack.c.bf16 %v928, %v928
        %v969 = vpack.c.bf16 %v931, %v931
        %v970 = vpack.c.bf16 %v933, %v933
        %v971 = vpack.c.bf16 %v936, %v936
        %v972 = vpack.c.bf16 %v938, %v938
        %v973 = vpack.c.bf16 %v941, %v941
        %v974 = vpack.c.bf16 %v943, %v943
        %v975 = vpack.c.bf16 %v946, %v946
        %v976 = vpack.c.bf16 %v948, %v948
        %v977 = vpack.c.bf16 %v951, %v951
        %v978 = vpack.c.bf16 %v953, %v953
        %v979 = vpack.c.bf16 %v956, %v956
        %v980 = vpack.c.bf16 %v958, %v958
        %v981 = vpack.c.bf16 %v961, %v961
        %v982 = vpack.c.bf16 %v963, %v963
        %v984 = vpack.i.b16 %v966, %v966
        %v986 = vperm.slane %v984, 0
        %v987 = vunpack.c.l.bf16 %v967
        %v988 = vunpack.c.l.bf16 %v968
        %v989 = vunpack.c.l.bf16 %v969
        %v990 = vunpack.c.l.bf16 %v970
        %v991 = vunpack.c.l.bf16 %v971
        %v992 = vunpack.c.l.bf16 %v972
        %v993 = vunpack.c.l.bf16 %v973
        %v994 = vunpack.c.l.bf16 %v974
        %v995 = vunpack.c.l.bf16 %v975
        %v996 = vunpack.c.l.bf16 %v976
        %v997 = vunpack.c.l.bf16 %v977
        %v998 = vunpack.c.l.bf16 %v978
        %v999 = vunpack.c.l.bf16 %v979
        %v1000 = vunpack.c.l.bf16 %v980
        %v1001 = vunpack.c.l.bf16 %v981
        %v1002 = vunpack.c.l.bf16 %v982
        %v1003 = vunpack.c.l.bf16 %v986
        %v1004 = vadd.f32 %v987, %v1003
        %v1005 = vadd.f32 %v988, %v1003
        %v1006 = vadd.f32 %v989, %v1003
        %v1007 = vadd.f32 %v990, %v1003
        %v1008 = vadd.f32 %v991, %v1003
        %v1009 = vadd.f32 %v992, %v1003
        %v1010 = vadd.f32 %v993, %v1003
        %v1011 = vadd.f32 %v994, %v1003
        %v1012 = vadd.f32 %v995, %v1003
        %v1013 = vadd.f32 %v996, %v1003
        %v1014 = vadd.f32 %v997, %v1003
        %v1015 = vadd.f32 %v998, %v1003
        %v1016 = vadd.f32 %v999, %v1003
        %v1017 = vadd.f32 %v1000, %v1003
        %v1018 = vadd.f32 %v1001, %v1003
        %v1019 = vadd.f32 %v1002, %v1003
        %v1020 = vpack.c.bf16 %v1004, %v1004
        %v1021 = vpack.c.bf16 %v1005, %v1005
        %v1022 = vpack.c.bf16 %v1006, %v1006
        %v1023 = vpack.c.bf16 %v1007, %v1007
        %v1024 = vpack.c.bf16 %v1008, %v1008
        %v1025 = vpack.c.bf16 %v1009, %v1009
        %v1026 = vpack.c.bf16 %v1010, %v1010
        %v1027 = vpack.c.bf16 %v1011, %v1011
        %v1028 = vpack.c.bf16 %v1012, %v1012
        %v1029 = vpack.c.bf16 %v1013, %v1013
        %v1030 = vpack.c.bf16 %v1014, %v1014
        %v1031 = vpack.c.bf16 %v1015, %v1015
        %v1032 = vpack.c.bf16 %v1016, %v1016
        %v1033 = vpack.c.bf16 %v1017, %v1017
        %v1034 = vpack.c.bf16 %v1018, %v1018
        %v1035 = vpack.c.bf16 %v1019, %v1019
        %v1036 = vunpack.c.l.bf16 %v1020
        %v1037 = vunpack.c.l.bf16 %v1021
        %v1038 = vunpack.c.l.bf16 %v1022
        %v1039 = vunpack.c.l.bf16 %v1023
        %v1040 = vunpack.c.l.bf16 %v1024
        %v1041 = vunpack.c.l.bf16 %v1025
        %v1042 = vunpack.c.l.bf16 %v1026
        %v1043 = vunpack.c.l.bf16 %v1027
        %v1044 = vunpack.c.l.bf16 %v1028
        %v1045 = vunpack.c.l.bf16 %v1029
        %v1046 = vunpack.c.l.bf16 %v1030
        %v1047 = vunpack.c.l.bf16 %v1031
        %v1048 = vunpack.c.l.bf16 %v1032
        %v1049 = vunpack.c.l.bf16 %v1033
        %v1050 = vunpack.c.l.bf16 %v1034
        %v1051 = vunpack.c.l.bf16 %v1035
        %v1052 = vmax.f32 %v1036, 0.0
        %v1053 = vmax.f32 %v1037, 0.0
        %v1054 = vmax.f32 %v1038, 0.0
        %v1055 = vmax.f32 %v1039, 0.0
        %v1056 = vmax.f32 %v1040, 0.0
        %v1057 = vmax.f32 %v1041, 0.0
        %v1058 = vmax.f32 %v1042, 0.0
        %v1059 = vmax.f32 %v1043, 0.0
        %v1060 = vmax.f32 %v1044, 0.0
        %v1061 = vmax.f32 %v1045, 0.0
        %v1062 = vmax.f32 %v1046, 0.0
        %v1063 = vmax.f32 %v1047, 0.0
        %v1064 = vmax.f32 %v1048, 0.0
        %v1065 = vmax.f32 %v1049, 0.0
        %v1066 = vmax.f32 %v1050, 0.0
        %v1067 = vmax.f32 %v1051, 0.0
        %v1068 = vpack.c.bf16 %v1053, %v1052
        %v1069 = vpack.c.bf16 %v1055, %v1054
        %v1070 = vpack.c.bf16 %v1057, %v1056
        %v1071 = vpack.c.bf16 %v1059, %v1058
        %v1072 = vpack.c.bf16 %v1061, %v1060
        %v1073 = vpack.c.bf16 %v1063, %v1062
        %v1074 = vpack.c.bf16 %v1065, %v1064
        %v1075 = vpack.c.bf16 %v1067, %v1066
        %v1076 = vld [vmem:[#allocation10] sm:$0xf]
        %v1077 = vld [vmem:[#allocation10 + $0x4] sm:$0xf]
        %v1078 = vld [vmem:[#allocation10 + $0x8] sm:$0xf]
        %v1079 = vld [vmem:[#allocation10 + $0xc] sm:$0xf]
        %v1080 = vld [vmem:[#allocation10 + $0x10] sm:$0xf]
        %v1081 = vld [vmem:[#allocation10 + $0x14] sm:$0xf]
        %v1082 = vld [vmem:[#allocation10 + $0x18] sm:$0xf]
        %v1083 = vld [vmem:[#allocation10 + $0x1c] sm:$0xf]
        %v1084 = vld [vmem:[#allocation10 + $0x20] sm:$0xf]
        %v1085 = vld [vmem:[#allocation10 + $0x24] sm:$0xf]
        %v1086 = vld [vmem:[#allocation10 + $0x28] sm:$0xf]
        %v1087 = vld [vmem:[#allocation10 + $0x2c] sm:$0xf]
        %v1088 = vld [vmem:[#allocation10 + $0x30] sm:$0xf]
        %v1089 = vld [vmem:[#allocation10 + $0x34] sm:$0xf]
        %v1090 = vld [vmem:[#allocation10 + $0x38] sm:$0xf]
        %v1091 = vld [vmem:[#allocation10 + $0x3c] sm:$0xf]
        %v1092 = vld [vmem:[%s5 + $0x3] sm:$0x1]
        %v1093 = vperm.slane %v1092, 0
        %v1110 = vunpack.c.l.b16 %v1076
        %v1111 = vunpack.c.l.b16 %v1077
        %v1112 = vunpack.c.l.b16 %v1078
        %v1113 = vunpack.c.l.b16 %v1079
        %v1114 = vunpack.c.l.b16 %v1080
        %v1115 = vunpack.c.l.b16 %v1081
        %v1116 = vunpack.c.l.b16 %v1082
        %v1117 = vunpack.c.l.b16 %v1083
        %v1118 = vunpack.c.l.b16 %v1084
        %v1119 = vunpack.c.l.b16 %v1085
        %v1120 = vunpack.c.l.b16 %v1086
        %v1121 = vunpack.c.l.b16 %v1087
        %v1122 = vunpack.c.l.b16 %v1088
        %v1123 = vunpack.c.l.b16 %v1089
        %v1124 = vunpack.c.l.b16 %v1090
        %v1125 = vunpack.c.l.b16 %v1091
        %v1126 = vpack.c.b16 %v1111, %v1110
        %v1127 = vpack.c.b16 %v1113, %v1112
        %v1128 = vpack.c.b16 %v1115, %v1114
        %v1129 = vpack.c.b16 %v1117, %v1116
        %v1130 = vpack.c.b16 %v1119, %v1118
        %v1131 = vpack.c.b16 %v1121, %v1120
        %v1132 = vpack.c.b16 %v1123, %v1122
        %v1133 = vpack.c.b16 %v1125, %v1124
        %1142 = vmatpush.bf16.msra.mxu0 %v1133
        %1143 = vmatpush.bf16.msra.mxu0 %v1132
        %1144 = vmatpush.bf16.msra.mxu0 %v1131
        %1145 = vmatpush.bf16.msra.mxu0 %v1130
        %1146 = vmatpush.bf16.msra.mxu0 %v1129
        %1147 = vmatpush.bf16.msra.mxu0 %v1128
        %1148 = vmatpush.bf16.msra.mxu0 %v1127
        %1149 = vmatpush.bf16.msra.mxu0 %v1126
        %1150 = vmatmul.bf16.gmra.mxu0 %v1068
        %v1151 = vpop.f32.mrf.mxu0
        %v1152 = vadd.f32 %v1093, %v1151
        %v1153 = vpop.f32.mrf.mxu0
        %v1154 = vadd.f32 %v1093, %v1153
        %1155 = vmatmul.bf16.gmra.mxu0 %v1069
        %v1156 = vpop.f32.mrf.mxu0
        %v1157 = vadd.f32 %v1093, %v1156
        %v1158 = vpop.f32.mrf.mxu0
        %v1159 = vadd.f32 %v1093, %v1158
        %1160 = vmatmul.bf16.gmra.mxu0 %v1070
        %v1161 = vpop.f32.mrf.mxu0
        %v1162 = vadd.f32 %v1093, %v1161
        %v1163 = vpop.f32.mrf.mxu0
        %v1164 = vadd.f32 %v1093, %v1163
        %1165 = vmatmul.bf16.gmra.mxu0 %v1071
        %v1166 = vpop.f32.mrf.mxu0
        %v1167 = vadd.f32 %v1093, %v1166
        %v1168 = vpop.f32.mrf.mxu0
        %v1169 = vadd.f32 %v1093, %v1168
        %1170 = vmatmul.bf16.gmra.mxu0 %v1072
        %v1171 = vpop.f32.mrf.mxu0
        %v1172 = vadd.f32 %v1093, %v1171
        %v1173 = vpop.f32.mrf.mxu0
        %v1174 = vadd.f32 %v1093, %v1173
        %1175 = vmatmul.bf16.gmra.mxu0 %v1073
        %v1176 = vpop.f32.mrf.mxu0
        %v1177 = vadd.f32 %v1093, %v1176
        %v1178 = vpop.f32.mrf.mxu0
        %v1179 = vadd.f32 %v1093, %v1178
        %1180 = vmatmul.bf16.gmra.mxu0 %v1074
        %v1181 = vpop.f32.mrf.mxu0
        %v1182 = vadd.f32 %v1093, %v1181
        %v1183 = vpop.f32.mrf.mxu0
        %v1184 = vadd.f32 %v1093, %v1183
        %1185 = vmatmul.bf16.gmra.mxu0 %v1075
        %v1186 = vpop.f32.mrf.mxu0
        %v1187 = vadd.f32 %v1093, %v1186
        %v1188 = vpop.f32.mrf.mxu0
        %v1189 = vadd.f32 %v1093, %v1188
        %1190 = vdwg.mxu0
        %v1191 = vsub.f32 0.0, %v1152
        %v1192 = vsub.f32 0.0, %v1154
        %v1193 = vsub.f32 0.0, %v1157
        %v1194 = vsub.f32 0.0, %v1159
        %v1195 = vsub.f32 0.0, %v1162
        %v1196 = vsub.f32 0.0, %v1164
        %v1197 = vsub.f32 0.0, %v1167
        %v1198 = vsub.f32 0.0, %v1169
        %v1199 = vsub.f32 0.0, %v1172
        %v1200 = vsub.f32 0.0, %v1174
        %v1201 = vsub.f32 0.0, %v1177
        %v1202 = vsub.f32 0.0, %v1179
        %v1203 = vsub.f32 0.0, %v1182
        %v1204 = vsub.f32 0.0, %v1184
        %v1205 = vsub.f32 0.0, %v1187
        %v1206 = vsub.f32 0.0, %v1189
        %v1207 = vmul.f32 %v1191, 1.442695
        %v1208 = vpow.pop %v1207
        %v1209 = vmul.f32 %v1192, 1.442695
        %v1210 = vpow.pop %v1209
        %v1211 = vmul.f32 %v1193, 1.442695
        %v1212 = vpow.pop %v1211
        %v1213 = vmul.f32 %v1194, 1.442695
        %v1214 = vpow.pop %v1213
        %v1215 = vmul.f32 %v1195, 1.442695
        %v1216 = vpow.pop %v1215
        %v1217 = vmul.f32 %v1196, 1.442695
        %v1218 = vpow.pop %v1217
        %v1219 = vmul.f32 %v1197, 1.442695
        %v1220 = vpow.pop %v1219
        %v1221 = vmul.f32 %v1198, 1.442695
        %v1222 = vpow.pop %v1221
        %v1223 = vmul.f32 %v1199, 1.442695
        %v1224 = vpow.pop %v1223
        %v1225 = vmul.f32 %v1200, 1.442695
        %v1226 = vpow.pop %v1225
        %v1227 = vmul.f32 %v1201, 1.442695
        %v1228 = vpow.pop %v1227
        %v1229 = vmul.f32 %v1202, 1.442695
        %v1230 = vpow.pop %v1229
        %v1231 = vmul.f32 %v1203, 1.442695
        %v1232 = vpow.pop %v1231
        %v1233 = vmul.f32 %v1204, 1.442695
        %v1234 = vpow.pop %v1233
        %v1235 = vmul.f32 %v1205, 1.442695
        %v1236 = vpow.pop %v1235
        %v1237 = vmul.f32 %v1206, 1.442695
        %v1238 = vpow.pop %v1237
        %v1239 = vadd.f32 %v1208, 1.0
        %v1240 = vadd.f32 %v1210, 1.0
        %v1241 = vadd.f32 %v1212, 1.0
        %v1242 = vadd.f32 %v1214, 1.0
        %v1243 = vadd.f32 %v1216, 1.0
        %v1244 = vadd.f32 %v1218, 1.0
        %v1245 = vadd.f32 %v1220, 1.0
        %v1246 = vadd.f32 %v1222, 1.0
        %v1247 = vadd.f32 %v1224, 1.0
        %v1248 = vadd.f32 %v1226, 1.0
        %v1249 = vadd.f32 %v1228, 1.0
        %v1250 = vadd.f32 %v1230, 1.0
        %v1251 = vadd.f32 %v1232, 1.0
        %v1252 = vadd.f32 %v1234, 1.0
        %v1253 = vadd.f32 %v1236, 1.0
        %v1254 = vadd.f32 %v1238, 1.0
        %v1255 = vrcp.pop %v1239
        %v1256 = vrcp.pop %v1240
        %v1257 = vrcp.pop %v1241
        %v1258 = vrcp.pop %v1242
        %v1259 = vrcp.pop %v1243
        %v1260 = vrcp.pop %v1244
        %v1261 = vrcp.pop %v1245
        %v1262 = vrcp.pop %v1246
        %v1263 = vrcp.pop %v1247
        %v1264 = vrcp.pop %v1248
        %v1265 = vrcp.pop %v1249
        %v1266 = vrcp.pop %v1250
        %v1267 = vrcp.pop %v1251
        %v1268 = vrcp.pop %v1252
        %v1269 = vrcp.pop %v1253
        %v1270 = vrcp.pop %v1254
        %1271 = vst [vmem:[%s337] sm:$0xff] %v1255
        %1272 = vst [vmem:[%s337 + $0x8] sm:$0xff] %v1256
        %1273 = vst [vmem:[%s337 + $0x10] sm:$0xff] %v1257
        %1274 = vst [vmem:[%s337 + $0x18] sm:$0xff] %v1258
        %1275 = vst [vmem:[%s337 + $0x20] sm:$0xff] %v1259
        %1276 = vst [vmem:[%s337 + $0x28] sm:$0xff] %v1260
        %1277 = vst [vmem:[%s337 + $0x30] sm:$0xff] %v1261
        %1278 = vst [vmem:[%s337 + $0x38] sm:$0xff] %v1262
        %1279 = vst [vmem:[%s337 + $0x40] sm:$0xff] %v1263
        %1280 = vst [vmem:[%s337 + $0x48] sm:$0xff] %v1264
        %1281 = vst [vmem:[%s337 + $0x50] sm:$0xff] %v1265
        %1282 = vst [vmem:[%s337 + $0x58] sm:$0xff] %v1266
        %1283 = vst [vmem:[%s337 + $0x60] sm:$0xff] %v1267
        %1284 = vst [vmem:[%s337 + $0x68] sm:$0xff] %v1268
        %1285 = vst [vmem:[%s337 + $0x70] sm:$0xff] %v1269
        %1286 = vst [vmem:[%s337 + $0x78] sm:$0xff] %v1270
        %s1287 = sand.u32 %s164, 1
        %s1288 = scalar_lea.sflag [#allocation4], %s1287
        %s1289 = sand.u32 %s164, 1
        %s1290 = smul.addr %s1289, 128
        %s1291 = scalar_lea.vmem [#allocation11], %s1290
        // Predicated region
        $region65: #{tpu_custom_call.1} parent=43 // pred_check
          %p1292 = pneg %p174
        $region66: #{tpu_custom_call.1} parent=43 // pred_check_branch
          %1294 = sbr.rel (%p1292) target = $region68
        $region67: #{tpu_custom_call.1} parent=43 // pred_region
          %s1295 = smul.u32 16, %s25
          %1297 = vsyncadd %s1288, 0
          %s1298 = smul.addr %s1295, 8
          %s1299 = scalar_lea.hbm %s6, %s1298
          %s1300 = sshll.u32 %s1291, 4
          %s1301 = int_to_ptr.vmem [resolvable:$true] %s1300
          %s1302 = sshll.u32 %s1299, 4
          %s1303 = int_to_ptr.hbm [resolvable:$true] %s1302
          %1308 = dma.vmem_to_hbm [thread:$0]  %s1301, 2048, %s1303, %s1288, 128, 128, 8
        $region68: #{tpu_custom_call.1} parent=43 // pred_fallthru
          _
      $region44: #{tpu_custom_call.1} parent=5 // pred_fallthru
        _
      %p1309 = scmp.le.s32.totalorder 2, %s20
      // Predicated region
      $region69: #{tpu_custom_call.1} parent=5 // pred_check
        %p1310 = pneg %p1309
      $region70: #{tpu_custom_call.1} parent=5 // pred_check_branch
        %1312 = sbr.rel (%p1310) target = $region72
      $region71: #{tpu_custom_call.1} parent=5 // pred_region
        %s1313 = ssub.s32 %s20, 2
        // Predicated region
        $region73: #{tpu_custom_call.1} parent=71 // pred_check
          %p1314 = pneg %p180
        $region74: #{tpu_custom_call.1} parent=71 // pred_check_branch
          %1316 = sbr.rel (%p1314) target = $region76
        $region75: #{tpu_custom_call.1} parent=71 // pred_region
          %s1317 = sand.u32 %s165, 1
          %s1318 = scalar_lea.sflag [#allocation4], %s1317
          %s1319 = sand.u32 %s165, 1
          %s1320 = smul.addr %s1319, 128
          %s1321 = scalar_lea.vmem [#allocation11], %s1320
          %1323 = dma.done %s1318, 2048
        $region76: #{tpu_custom_call.1} parent=71 // pred_fallthru
          _
      $region72: #{tpu_custom_call.1} parent=5 // pred_fallthru
        _
    $region6: #{tpu_custom_call.1} parent=1 // loop_footer
      %s24 = sadd.s32 1, %s20
    $region7: #{tpu_custom_call.1} parent=1 // loop_footer_branch
      %19 = sbr.rel target = $region3
    $region8: #{tpu_custom_call.1} parent=1 // loop_exit
      _
    %1324 = vsyncpa [#allocation3], 1
    %s1325 = scalar_lea.sflag [#allocation3], 1
    %1326 = vsyncpa %s1325, 1
    %1327 = vsyncpa [#allocation6], 1
    %1328 = vsyncpa [#allocation9], 1
    %1329 = vsyncpa [#allocation4], 1
    %s1330 = scalar_lea.sflag [#allocation4], 1
    %1331 = vsyncpa %s1330, 1

</llo_original>
